<compile_context>
chip_gen: v7x
topology: tpu7x:2x2x1
jax: 0.10.0
libtpu: 0.0.40
codegen_flags: <defaults>
</compile_context>

<pallas_src>
import jax
import jax.numpy as jnp
from jax.experimental import pallas as pl
from jax.experimental.pallas import tpu as pltpu


def _round_up(x, m):
    return (x + m - 1) // m * m


def _device_kind():
    try:
        return jax.devices()[0].device_kind.lower()
    except Exception:
        return ""


def _vmem_budget_bytes(kind):
    if "v7" in kind:
        return 48 * 1024 * 1024   # 64 MiB physical on v7x -> leave headroom
    if "v5" in kind or "v6" in kind:
        return 96 * 1024 * 1024   # 128 MiB physical on v5e/v6e
    return 48 * 1024 * 1024       # unknown -> conservative


def _pick_lane_tile(total, cap):
    """Largest multiple of 128 <= cap that divides `total` (total % 128 == 0)."""
    cap = max(128, (min(cap, total) // 128) * 128)
    for cand in range(cap, 127, -128):
        if total % cand == 0:
            return cand
    return 128


# ----------------------------- kernels --------------------------------------


def _query_kernel_single_k(x_ref, w_ref, o_ref):
    # x_ref: (tm, K), w_ref: (K, tn), o_ref: (tm, tn). No scratch, no pl.when.
    o_ref[...] = jnp.dot(
        x_ref[...], w_ref[...], preferred_element_type=jnp.float32
    ).astype(o_ref.dtype)


def _query_kernel_multi_k_f32(x_ref, w_ref, o_ref):
    # o_ref is f32 and resident across the K grid axis: accumulate into it
    # directly (no scratch, no zero-fill pass).
    k = pl.program_id(2)
    p = jnp.dot(x_ref[...], w_ref[...], preferred_element_type=jnp.float32)

    @pl.when(k == 0)
    def _():
        o_ref[...] = p

    @pl.when(k > 0)
    def _():
        o_ref[...] += p


def _query_kernel_multi_k_acc(x_ref, w_ref, o_ref, acc_ref):
    # Non-f32 output: f32 scratch accumulator, assigned (not zero+add) at k==0.
    k = pl.program_id(2)
    p = jnp.dot(x_ref[...], w_ref[...], preferred_element_type=jnp.float32)

    @pl.when(k == 0)
    def _():
        acc_ref[...] = p

    @pl.when(k > 0)
    def _():
        acc_ref[...] += p

    @pl.when(k == pl.num_programs(2) - 1)
    def _():
        o_ref[...] = acc_ref[...].astype(o_ref.dtype)


# ----------------------------- wrapper ---------------------------------------


def prepare_query_weight(weight, compute_dtype=None):
    """One-time prep of fc1.weight (nn.Linear layout (dim_attn, dim_input)).

    Transposes to (dim_input, dim_attn), pads dim_attn up to a multiple of 128
    (lane-dense, unmasked stores) and optionally casts to a compute dtype.
    Call once at parameter-load time; pass the result to query_forward.
    """
    if compute_dtype is not None:
        weight = weight.astype(compute_dtype)
    d_attn, _ = weight.shape
    n_pad = _round_up(d_attn, 128)
    w_t = weight.T  # (dim_input, dim_attn)
    if n_pad != d_attn:
        w_t = jnp.pad(w_t, ((0, 0), (0, n_pad - d_attn)))
    return w_t


def query_forward(x, w_t, *, dim_attn=None, tm_max=512, tn_max=2048):
    """x: (..., dim_input); w_t: prepared weight (dim_input, n_pad)."""
    *lead, d_in = x.shape
    k_dim, n_pad = w_t.shape
    assert k_dim == d_in, "prepared weight must be (dim_input, n_pad)"
    n_out = n_pad if dim_attn is None else dim_attn

    out_dtype = x.dtype
    if x.dtype != w_t.dtype:
        x = x.astype(w_t.dtype)  # bf16 compute opt-in: cast activations only

    M = 1
    for d in lead:
        M *= d
    K = d_in
    x2d = x.reshape(M, K)

    in_b = jnp.dtype(w_t.dtype).itemsize
    out_b = jnp.dtype(out_dtype).itemsize
    out_is_f32 = jnp.dtype(out_dtype) == jnp.dtype(jnp.float32)

    kind = _device_kind()
    budget = _vmem_budget_bytes(kind)

    # ---- M tiling: balanced tiles, padded only to sublane alignment. --------
    m_align = 8 if in_b >= 4 else 16
    m_aligned = _round_up(M, m_align)
    m_tiles = pl.cdiv(m_aligned, tm_max)
    if "v7" in kind and m_tiles < 2 and m_aligned >= 2 * m_align:
        m_tiles = 2  # leading "parallel" axis spans both v7x TensorCores
    tm = _round_up(pl.cdiv(m_aligned, m_tiles), m_align)
    m_pad = tm * m_tiles

    # ---- N tiling: divisor of n_pad, bounded for large dim_attn. -----------
    tn = _pick_lane_tile(n_pad, tn_max)
    n_tiles = n_pad // tn

    # ---- K tiling: keep the weight K-resident whenever the budget allows. --
    def _vmem_est(tk_, with_acc):
        return (2 * tm * tk_ * in_b          # x tile, double-buffered
                + 2 * tk_ * tn * in_b        # weight tile, double-buffered
                + 2 * tm * tn * out_b        # output tile, double-buffered
                + (tm * tn * 4 if with_acc else 0))

    if _vmem_est(K, False) <= budget:
        tk, k_pad, k_tiles, use_acc = K, K, 1, False
    else:
        use_acc = not out_is_f32
        fixed = 2 * tm * tn * out_b + (tm * tn * 4 if use_acc else 0)
        tk_cap = max(128, ((budget - fixed) // (2 * in_b * (tm + tn)) // 128) * 128)
        tk = None
        start = min(tk_cap, (K // 128) * 128)
        for cand in range(start, 127, -128):   # prefer tk that divides K
            if K % cand == 0:
                tk = cand
                break
        if tk is None or tk < tk_cap // 2:
            tk = tk_cap                        # rare: accept K padding below
        k_pad = _round_up(K, tk)
        k_tiles = k_pad // tk

    # ---- Wrapper-side padding only where unavoidable. ----------------------
    pad_m, pad_k = m_pad - M, k_pad - K
    if pad_m or pad_k:
        x2d = jnp.pad(x2d, ((0, pad_m), (0, pad_k)))
    w_in = w_t
    if pad_k:
        # Rare path (forced K tiling with K not divisible by a good tk).
        # Zero rows contribute nothing to the contraction.
        w_in = jnp.pad(w_t, ((0, pad_k), (0, 0)))

    grid = (m_tiles, n_tiles, k_tiles)

    if k_tiles == 1:
        kernel = _query_kernel_single_k
        scratch = []
    elif not use_acc:
        kernel = _query_kernel_multi_k_f32
        scratch = []
    else:
        kernel = _query_kernel_multi_k_acc
        scratch = [pltpu.VMEM((tm, tn), jnp.float32)]

    cost = pl.CostEstimate(
        flops=2 * m_pad * k_pad * n_pad,
        transcendentals=0,
        bytes_accessed=(m_pad * k_pad * in_b
                        + k_pad * n_pad * in_b
                        + m_pad * n_pad * out_b),
    )

    out2d = pl.pallas_call(
        kernel,
        out_shape=jax.ShapeDtypeStruct((m_pad, n_pad), out_dtype),
        grid_spec=pltpu.PrefetchScalarGridSpec(
            num_scalar_prefetch=0,
            grid=grid,
            in_specs=[
                pl.BlockSpec((tm, tk), lambda i, j, k: (i, k)),   # activations
                pl.BlockSpec((tk, tn), lambda i, j, k: (k, j)),   # weight (K, N)
            ],
            out_specs=pl.BlockSpec((tm, tn), lambda i, j, k: (i, j)),
            scratch_shapes=scratch,
        ),
        compiler_params=pltpu.CompilerParams(
            dimension_semantics=("parallel", "parallel", "arbitrary"),
            vmem_limit_bytes=int(budget),
        ),
        cost_estimate=cost,
    )(x2d, w_in)

    if m_pad != M or n_pad != n_out:
        out2d = out2d[:M, :n_out]
    return out2d.reshape(*lead, n_out)


if __name__ == "__main__":
    # Small shapes consistent with the module: batch=2, seq=8, dim_input=32,
    # dim_attn=64.
    B, S, D_IN, D_ATTN = 2, 8, 32, 64

    key = jax.random.PRNGKey(0)
    kx, kw = jax.random.split(key)

    x = jax.random.normal(kx, (B, S, D_IN), dtype=jnp.float32)
    # Deterministic "fc1.weight", nn.Linear shape (dim_attn, dim_input).
    weight = jax.random.normal(kw, (D_ATTN, D_IN), dtype=jnp.float32) * 0.02

    ref = jnp.einsum("bsd,ad->bsa", x, weight)

    # f32 path (exact module semantics). Weight prep happens once, out of the
    # forward path.
    w_prepared = prepare_query_weight(weight)
    out = query_forward(x, w_prepared, dim_attn=D_ATTN)
    out = jax.block_until_ready(out)
    assert out.shape == (B, S, D_ATTN)
    assert jnp.allclose(out, ref, atol=1e-5, rtol=1e-5)

    # bf16 compute path (memory-bound perf option), f32 output/accumulate.
    w_prepared_bf16 = prepare_query_weight(weight, compute_dtype=jnp.bfloat16)
    out_bf16 = query_forward(x, w_prepared_bf16, dim_attn=D_ATTN)
    out_bf16 = jax.block_until_ready(out_bf16)
    assert out_bf16.shape == (B, S, D_ATTN)
    assert jnp.allclose(out_bf16, ref, atol=5e-2, rtol=5e-2)

    print("KERNEL_OK")
</pallas_src>

<mosaic_0001>
module attributes {stable_mosaic.version = 11 : i64} {
  func.func @_query_kernel_single_k(%arg0: i32, %arg1: i32, %arg2: i32, %arg3: memref<16x32xf32, #tpu.memory_space<vmem>>, %arg4: memref<32x128xf32, #tpu.memory_space<vmem>>, %arg5: memref<16x128xf32, #tpu.memory_space<vmem>>) attributes {dimension_semantics = [#tpu.dimension_semantics<parallel>, #tpu.dimension_semantics<parallel>, #tpu.dimension_semantics<arbitrary>], iteration_bounds = array<i64: 1, 1, 1>, scalar_prefetch = 0 : i64, scratch_operands = 0 : i64, tpu.core_type = #tpu.core_type<tc>, window_params = [{transform_indices = @transform_0, window_bounds = array<i64: 16, 32>}, {transform_indices = @transform_1, window_bounds = array<i64: 32, 128>}, {transform_indices = @transform_2, window_bounds = array<i64: 16, 128>}]} {
    %c0 = arith.constant 0 : index
    %c0_0 = arith.constant 0 : index
    %0 = vector.load %arg3[%c0, %c0_0] : memref<16x32xf32, #tpu.memory_space<vmem>>, vector<16x32xf32>
    %c0_1 = arith.constant 0 : index
    %c0_2 = arith.constant 0 : index
    %1 = vector.load %arg4[%c0_1, %c0_2] : memref<32x128xf32, #tpu.memory_space<vmem>>, vector<32x128xf32>
    %cst = arith.constant dense<0.000000e+00> : vector<16x128xf32>
    %2 = tpu.matmul %0, %1, %cst {dimension_numbers = #tpu.dot_dimension_numbers<[1], [0], [0], [1], [0, 0, 1, 1], [], []>} : vector<16x32xf32>, vector<32x128xf32>, vector<16x128xf32> -> vector<16x128xf32>
    %c0_3 = arith.constant 0 : index
    %c0_4 = arith.constant 0 : index
    %3 = vector.load %arg5[%c0_3, %c0_4] : memref<16x128xf32, #tpu.memory_space<vmem>>, vector<16x128xf32>
    tpu.vector_store %arg5[%c0_3, %c0_4], %2 {strides = array<i32>} : memref<16x128xf32, #tpu.memory_space<vmem>>, vector<16x128xf32>,
    return
  }
  func.func @transform_0(%arg0: i32, %arg1: i32, %arg2: i32) -> (i32, i32) {
    %c0_i32 = arith.constant 0 : i32
    return %arg0, %arg2 : i32, i32
  }
  func.func @transform_1(%arg0: i32, %arg1: i32, %arg2: i32) -> (i32, i32) {
    %c0_i32 = arith.constant 0 : i32
    return %arg2, %arg1 : i32, i32
  }
  func.func @transform_2(%arg0: i32, %arg1: i32, %arg2: i32) -> (i32, i32) {
    %c0_i32 = arith.constant 0 : i32
    return %arg0, %arg1 : i32, i32
  }
}

</mosaic_0001>

<llo_original>
// kernel: tpu_custom_call.1
$region0: #{tpu_custom_call.1}
  #allocation0 [shape = 'u32[]', space=smem, size = 0x4, offset = 0x4, fixed_abs, tag = 'smem constant byte address 0x4 - core index']
  #allocation1 [shape = 'u32[144,128]{1,0:T(1,128)}', space=vmem, size = 0x12000, scoped, tag = 'internal scratch']
  %s0 = inlined_call_operand.hbm [shape: f32[16,32], index: 0, kind: input, shape index: {}]
  %s1 = inlined_call_operand.hbm [shape: f32[32,128], index: 1, kind: input, shape index: {}]
  %s2 = inlined_call_operand.hbm [shape: f32[16,128], index: 2, kind: output, shape index: {}]
  %s3 = sld [smem:[#allocation0]]
  $region26: #{tpu_custom_call.1} parent=0
    _
  %s5 = ssub.s32 1, %s3
  %s6 = scalar_select 0, %s5, %s3
  $region1: #{tpu_custom_call.1} parent=0
    #allocation2 [shape = 'u8[8192]{0}', space=vmem, size = 0x2000, scoped, tag = 'input window, operand 0, single buffered']
    #allocation3 [shape = 's32[1]{0}', space=sflag, size = 0x4, scoped, tag = 'scoped memory for tpu_custom_call.1']
    #allocation4 [shape = 's32[1]{0}', space=sflag, size = 0x4, scoped, tag = 'scoped memory for tpu_custom_call.1']
    #allocation5 [shape = 'u8[16384]{0}', space=vmem, size = 0x4000, scoped, tag = 'input window, operand 1, single buffered']
    #allocation6 [shape = 's32[1]{0}', space=sflag, size = 0x4, scoped, tag = 'scoped memory for tpu_custom_call.1']
    #allocation7 [shape = 'u8[8192]{0}', space=vmem, size = 0x2000, scoped, tag = 'output window, operand 0, single buffered']
    %7 = vsyncpa [#allocation3], 0
    %8 = vsyncpa [#allocation6], 0
    %9 = vsyncpa [#allocation4], 0
    // Predicated region
    $region2: #{tpu_custom_call.1} parent=1 // pred_check
      _
    $region3: #{tpu_custom_call.1} parent=1 // pred_check_branch
      %11 = sbr.rel (0) target = $region5
    $region4: #{tpu_custom_call.1} parent=1 // pred_region
      %s13 = ssub.s32 256, 256
      %14 = vsyncadd [#allocation3], %s13
      %s15 = sshll.u32 [#allocation2], 4
      %s16 = int_to_ptr.vmem [resolvable:$true] %s15
      %21 = dma.hbm_to_vmem [thread:$0]  %s0, 256, %s16, [#allocation3], 128, 128, 8
    $region5: #{tpu_custom_call.1} parent=1 // pred_fallthru
      _
    // Predicated region
    $region6: #{tpu_custom_call.1} parent=1 // pred_check
      _
    $region7: #{tpu_custom_call.1} parent=1 // pred_check_branch
      %23 = sbr.rel (0) target = $region9
    $region8: #{tpu_custom_call.1} parent=1 // pred_region
      %s25 = ssub.s32 512, 512
      %26 = vsyncadd [#allocation6], %s25
      %s27 = sshll.u32 [#allocation5], 4
      %s28 = int_to_ptr.vmem [resolvable:$true] %s27
      %33 = dma.hbm_to_vmem [thread:$0]  %s1, 512, %s28, [#allocation6], 128, 128, 8
    $region9: #{tpu_custom_call.1} parent=1 // pred_fallthru
      _
    // Predicated region
    $region10: #{tpu_custom_call.1} parent=1 // pred_check
      _
    $region11: #{tpu_custom_call.1} parent=1 // pred_check_branch
      %35 = sbr.rel (0) target = $region13
    $region12: #{tpu_custom_call.1} parent=1 // pred_region
      %36 = dma.done [#allocation3], 256
    $region13: #{tpu_custom_call.1} parent=1 // pred_fallthru
      _
    // Predicated region
    $region14: #{tpu_custom_call.1} parent=1 // pred_check
      _
    $region15: #{tpu_custom_call.1} parent=1 // pred_check_branch
      %38 = sbr.rel (0) target = $region17
    $region16: #{tpu_custom_call.1} parent=1 // pred_region
      %39 = dma.done [#allocation6], 512
    $region17: #{tpu_custom_call.1} parent=1 // pred_fallthru
      _
    %v40 = vld [vmem:[#allocation2] sm:$0xff]
    %v41 = vld [vmem:[#allocation2 + $0x8] sm:$0xff]
    %v42 = vld [vmem:[#allocation5] sm:$0xff]
    %v43 = vld [vmem:[#allocation5 + $0x8] sm:$0xff]
    %v44 = vld [vmem:[#allocation5 + $0x10] sm:$0xff]
    %v45 = vld [vmem:[#allocation5 + $0x18] sm:$0xff]
    %vm46 = vcmask 261120
    %v48 = vsel %vm46, %v40, 0
    %v51 = vsel %vm46, %v41, 0
    %53 = vmatprep.subr.mxu0 0.0
    %54 = vmatpush1.msra.mxu0 %v42
    %55 = vmatprep.subr.mxu0 0.0
    %56 = vmatpush1.msra.mxu0 %v43
    %57 = vmatprep.subr.mxu0 0.0
    %58 = vmatpush1.msra.mxu0 %v44
    %59 = vmatprep.subr.mxu0 0.0
    %60 = vmatpush1.msra.mxu0 %v45
    %61 = vmatprep.subr.mxu0 0.0
    %62 = vmatpush1.msra.mxu0 0.0
    %63 = vmatprep.subr.mxu0 0.0
    %64 = vmatpush1.msra.mxu0 0.0
    %65 = vmatprep.subr.mxu0 0.0
    %66 = vmatpush1.msra.mxu0 0.0
    %67 = vmatprep.subr.mxu0 0.0
    %68 = vmatpush1.msra.mxu0 0.0
    %69 = vmatprep.subr.mxu0 0.0
    %70 = vmatpush1.msra.mxu0 0.0
    %71 = vmatprep.subr.mxu0 0.0
    %72 = vmatpush1.msra.mxu0 0.0
    %73 = vmatprep.subr.mxu0 0.0
    %74 = vmatpush1.msra.mxu0 0.0
    %75 = vmatprep.subr.mxu0 0.0
    %76 = vmatpush1.msra.mxu0 0.0
    %77 = vmatprep.subr.mxu0 0.0
    %78 = vmatpush1.msra.mxu0 0.0
    %79 = vmatprep.subr.mxu0 0.0
    %80 = vmatpush1.msra.mxu0 0.0
    %81 = vmatprep.subr.mxu0 0.0
    %82 = vmatpush1.msra.mxu0 0.0
    %83 = vmatprep.subr.mxu0 0.0
    %84 = vmatpush1.msra.mxu0 0.0
    %85 = vmatprep.subr.mxu0 0.0
    %86 = vmatpush1.msra.mxu0 0.0
    %87 = vmatprep.subr.mxu0 0.0
    %88 = vmatpush1.msra.mxu0 0.0
    %89 = vmatprep.subr.mxu0 0.0
    %90 = vmatpush1.msra.mxu0 0.0
    %91 = vmatprep.subr.mxu0 0.0
    %92 = vmatpush1.msra.mxu0 0.0
    %93 = vmatprep.subr.mxu0 0.0
    %94 = vmatpush1.msra.mxu0 0.0
    %95 = vmatprep.subr.mxu0 0.0
    %96 = vmatpush1.msra.mxu0 0.0
    %97 = vmatprep.subr.mxu0 0.0
    %98 = vmatpush1.msra.mxu0 0.0
    %99 = vmatprep.subr.mxu0 0.0
    %100 = vmatpush1.msra.mxu0 0.0
    %101 = vmatprep.subr.mxu0 0.0
    %102 = vmatpush1.msra.mxu0 0.0
    %103 = vmatprep.subr.mxu0 0.0
    %104 = vmatpush1.msra.mxu0 0.0
    %105 = vmatprep.subr.mxu0 0.0
    %106 = vmatpush1.msra.mxu0 0.0
    %107 = vmatprep.subr.mxu0 0.0
    %108 = vmatpush1.msra.mxu0 0.0
    %109 = vmatprep.subr.mxu0 0.0
    %110 = vmatpush1.msra.mxu0 0.0
    %111 = vmatprep.subr.mxu0 0.0
    %112 = vmatpush1.msra.mxu0 0.0
    %113 = vmatprep.subr.mxu0 0.0
    %114 = vmatpush1.msra.mxu0 0.0
    %115 = vmatprep.subr.mxu0 0.0
    %116 = vmatpush1.msra.mxu0 0.0
    %117 = vmatprep.mubr.f32.mxu0 0.0
    %118 = vmatmul.mubr.f32.gmra.mrb[0].mxu0 %v48
    %v119 = vpop.f32.mrb[0].mxu0
    %v120 = vadd.f32 0.0, %v119
    %v121 = vpop.f32.mrb[0].mxu0
    %122 = vmatprep.mubr.f32.mxu0 0.0
    %123 = vmatmul.mubr.f32.gmra.mrb[0].mxu0 %v51
    %v124 = vpop.f32.mrb[0].mxu0
    %v125 = vadd.f32 0.0, %v124
    %v126 = vpop.f32.mrb[0].mxu0
    %127 = vdwg.mxu0
    %128 = vst [vmem:[#allocation7] sm:$0xff] %v120
    %129 = vst [vmem:[#allocation7 + $0x8] sm:$0xff] %v125
    // Predicated region
    $region18: #{tpu_custom_call.1} parent=1 // pred_check
      _
    $region19: #{tpu_custom_call.1} parent=1 // pred_check_branch
      %131 = sbr.rel (0) target = $region21
    $region20: #{tpu_custom_call.1} parent=1 // pred_region
      %s133 = ssub.s32 256, 256
      %134 = vsyncadd [#allocation4], %s133
      %s135 = sshll.u32 [#allocation7], 4
      %s136 = int_to_ptr.vmem [resolvable:$true] %s135
      %141 = dma.vmem_to_hbm [thread:$0]  %s136, 256, %s2, [#allocation4], 128, 128, 8
    $region21: #{tpu_custom_call.1} parent=1 // pred_fallthru
      _
    // Predicated region
    $region22: #{tpu_custom_call.1} parent=1 // pred_check
      _
    $region23: #{tpu_custom_call.1} parent=1 // pred_check_branch
      %143 = sbr.rel (0) target = $region25
    $region24: #{tpu_custom_call.1} parent=1 // pred_region
      %144 = dma.done [#allocation4], 256
    $region25: #{tpu_custom_call.1} parent=1 // pred_fallthru
      _
    %145 = vsyncpa [#allocation3], 1
    %146 = vsyncpa [#allocation6], 1
    %147 = vsyncpa [#allocation4], 1

</llo_original>
